<compile_context>
chip_gen: v7x
topology: tpu7x:2x2x1
jax: 0.10.0
libtpu: 0.0.40
codegen_flags: <defaults>
</compile_context>

<pallas_src>
import functools

import jax
import jax.numpy as jnp
from jax.experimental import pallas as pl
from jax.experimental.pallas import tpu as pltpu


def _round_up(x, m):
    return ((x + m - 1) // m) * m


def _device_kind():
    try:
        return jax.devices()[0].device_kind.lower()
    except Exception:
        return ""


def _is_v7():
    k = _device_kind()
    return ("v7" in k) or ("7x" in k)


def _vmem_limit_bytes():
    # v5e/v6e have 128 MiB physical VMEM, v7x has 64 MiB: leave headroom.
    if _is_v7():
        return 48 * 1024 * 1024
    k = _device_kind()
    if ("v5" in k) or ("v6" in k):
        return 100 * 1024 * 1024
    return 64 * 1024 * 1024


def _pick_row_tile(hw):
    # 256-row MXU on v6e/v7x; 512 is comfortable under 128 MiB VMEM (v5e/v6e),
    # 256 is the safe default under v7x's 64 MiB.
    cap = 256 if _is_v7() else 512
    return min(cap, _round_up(hw, 8))


_FREQ_TILE = 2048   # frequency columns per grid step (sum_pool path)


# ---------------------------------------------------------------------------
# Parameter precomputation (done once, like module __init__)
# ---------------------------------------------------------------------------

def make_cbp_weights(sketch1, sketch2, output_dim):
    """Fuse the count-sketch matrices with the half-spectrum (rfft) DFT and
    build the inverse-DFT matrices.  Hoisted out of the per-call wrapper."""
    d = int(output_dim)
    dh = d // 2 + 1                        # rfft half-spectrum length
    dfp = _round_up(dh, 128)               # lane-dense padded frequency dim
    if dfp > _FREQ_TILE:
        dfp = _round_up(dh, _FREQ_TILE)    # keep it tileable by the freq grid axis
    dop = _round_up(d, 128)                # lane-dense padded output dim (no-pool path)

    # Exact angle reduction: (n*f) mod d in int32 before scaling by 2*pi/d.
    # (int32 products are exact here for d up to ~46k; go int64/host-f64 beyond.)
    n = jnp.arange(d, dtype=jnp.int32)
    f = jnp.arange(dh, dtype=jnp.int32)
    nf = (n[:, None] * f[None, :]) % d                       # [d, dh]
    ang = (2.0 * jnp.pi / d) * nf.astype(jnp.float32)
    cos_nf = jnp.cos(ang)                                    # [d, dh]
    sin_nf = jnp.sin(ang)                                    # [d, dh]

    def fwd(sk):
        # rfft(x @ sketch):  re = y @ cos,  im = -(y @ sin); sketch folded in.
        sk = sk.astype(jnp.float32)
        wre = jnp.pad(sk @ cos_nf, ((0, 0), (0, dfp - dh)))
        wim = jnp.pad(-(sk @ sin_nf), ((0, 0), (0, dfp - dh)))
        return wre.astype(jnp.bfloat16), wim.astype(jnp.bfloat16)

    w1_re, w1_im = fwd(sketch1)
    w2_re, w2_im = fwd(sketch2)

    # Half-spectrum inverse DFT (irfft 1/d cancels the trailing * output_dim):
    #   cbp[n] = sum_f h[f] * (Pr[f]*cos(2*pi*n*f/d) - Pi[f]*sin(2*pi*n*f/d))
    # with Hermitian weights h = 2, except h[0] = 1 and h[d/2] = 1 for even d.
    herm = jnp.full((dh,), 2.0, jnp.float32).at[0].set(1.0)
    if d % 2 == 0:
        herm = herm.at[dh - 1].set(1.0)
    winv_re = (cos_nf * herm[None, :]).T                     # [dh, d]  f32
    winv_im = (-sin_nf * herm[None, :]).T                    # [dh, d]  f32

    # Zero-padded bf16 copies for the no-pool kernel (padded rows/cols stay 0).
    winv_re_p = jnp.pad(winv_re, ((0, dfp - dh), (0, dop - d))).astype(jnp.bfloat16)
    winv_im_p = jnp.pad(winv_im, ((0, dfp - dh), (0, dop - d))).astype(jnp.bfloat16)

    return dict(w1_re=w1_re, w1_im=w1_im, w2_re=w2_re, w2_im=w2_im,
                winv_re=winv_re, winv_im=winv_im,
                winv_re_p=winv_re_p, winv_im_p=winv_im_p)


# ---------------------------------------------------------------------------
# Kernels
# ---------------------------------------------------------------------------

def _cbp_pooled_spectrum_kernel(x1_ref, x2_ref, w1re_ref, w1im_ref,
                                w2re_ref, w2im_ref, out_ref, acc_ref, *, tf):
    """sum_pool=True: accumulate the pooled product spectrum over row tiles.

    Grid: (batch, freq-tile, row-tile).  The inverse DFT happens in the wrapper.
      x*_ref:  [tR, C]   bf16        w*_ref: [C, tF] bf16
      out_ref: [1, 2*tF] f32         acc_ref: [1, 2*tF] f32 VMEM scratch
    """
    r = pl.program_id(2)

    @pl.when(r == 0)
    def _():
        acc_ref[...] = jnp.zeros_like(acc_ref)

    x1 = x1_ref[...]
    x2 = x2_ref[...]
    # Count-sketch + rfft fused into one bf16 matmul per (input, re/im), f32 acc.
    re1 = jnp.dot(x1, w1re_ref[...], preferred_element_type=jnp.float32)
    im1 = jnp.dot(x1, w1im_ref[...], preferred_element_type=jnp.float32)
    re2 = jnp.dot(x2, w2re_ref[...], preferred_element_type=jnp.float32)
    im2 = jnp.dot(x2, w2im_ref[...], preferred_element_type=jnp.float32)

    # Complex product of the spectra (f32 VPU) + hoisted sum-pool (XLU),
    # accumulated directly into the re / im halves (no concat temporary).
    pr = re1 * re2 - im1 * im2
    pi = re1 * im2 + im1 * re2
    acc_ref[:, :tf] += jnp.sum(pr, axis=0, keepdims=True)
    acc_ref[:, tf:] += jnp.sum(pi, axis=0, keepdims=True)

    @pl.when(r == pl.num_programs(2) - 1)
    def _():
        out_ref[...] = acc_ref[...]


def _cbp_nopool_kernel(x1_ref, x2_ref, w1re_ref, w1im_ref, w2re_ref, w2im_ref,
                       vre_ref, vim_ref, out_ref):
    """sum_pool=False: per-row-tile CBP output [tR, dop]."""
    x1 = x1_ref[...]
    x2 = x2_ref[...]
    re1 = jnp.dot(x1, w1re_ref[...], preferred_element_type=jnp.float32)
    im1 = jnp.dot(x1, w1im_ref[...], preferred_element_type=jnp.float32)
    re2 = jnp.dot(x2, w2re_ref[...], preferred_element_type=jnp.float32)
    im2 = jnp.dot(x2, w2im_ref[...], preferred_element_type=jnp.float32)

    # Complex product; no [tR, 2*dfp] concat — two bf16 matmuls with f32 acc.
    pr = (re1 * re2 - im1 * im2).astype(jnp.bfloat16)
    pi = (re1 * im2 + im1 * re2).astype(jnp.bfloat16)
    out = jnp.dot(pr, vre_ref[...], preferred_element_type=jnp.float32)
    out = out + jnp.dot(pi, vim_ref[...], preferred_element_type=jnp.float32)
    out_ref[...] = out.astype(out_ref.dtype)


# ---------------------------------------------------------------------------
# Wrapper (per-call forward; weights precomputed by make_cbp_weights)
# ---------------------------------------------------------------------------

@functools.partial(jax.jit, static_argnames=("sum_pool",))
def compact_bilinear_pooling(x1, x2, weights, *, sum_pool=True):
    """x1: [N, C1, H, W], x2: [N, C2, H, W] (NCHW).  Matches the torch forward."""
    N, C1, H, W = x1.shape
    _, C2, _, _ = x2.shape
    HW = H * W
    dfp = weights["w1_re"].shape[1]
    dh, d = weights["winv_re"].shape
    dop = weights["winv_re_p"].shape[1]

    # NCHW -> [N, HW, C]; bf16 MXU operands (cast fuses with transpose under jit).
    # TODO(synk): accept NHWC inputs directly to skip this extra HBM relayout pass.
    x1f = jnp.transpose(x1, (0, 2, 3, 1)).reshape(N, HW, C1).astype(jnp.bfloat16)
    x2f = jnp.transpose(x2, (0, 2, 3, 1)).reshape(N, HW, C2).astype(jnp.bfloat16)

    # Pad the row (H*W) axis to the tile: zero rows contribute nothing to the
    # pooled spectrum and are sliced off in the no-pool path.
    tr = _pick_row_tile(HW)
    hwp = _round_up(HW, tr)
    if hwp != HW:
        x1f = jnp.pad(x1f, ((0, 0), (0, hwp - HW), (0, 0)))
        x2f = jnp.pad(x2f, ((0, 0), (0, hwp - HW), (0, 0)))
    n_row = hwp // tr

    x_specs = [
        pl.BlockSpec((None, tr, C1), (lambda b, f, r: (b, r, 0)) if sum_pool
                     else (lambda b, r: (b, r, 0))),
        pl.BlockSpec((None, tr, C2), (lambda b, f, r: (b, r, 0)) if sum_pool
                     else (lambda b, r: (b, r, 0))),
    ]

    if sum_pool:
        # Frequency grid axis keeps resident weights bounded for large output_dim.
        tf = min(_FREQ_TILE, dfp)
        n_freq = dfp // tf
        single_buf = (n_freq == 1)   # grid-constant weights -> single-buffer them

        def wspec(c):
            if single_buf:
                return pl.BlockSpec((c, tf), lambda b, f, r: (0, f),
                                    pipeline_mode=pl.Buffered(1))
            return pl.BlockSpec((c, tf), lambda b, f, r: (0, f))

        spec = pl.pallas_call(
            functools.partial(_cbp_pooled_spectrum_kernel, tf=tf),
            grid=(N, n_freq, n_row),
            in_specs=x_specs + [wspec(C1), wspec(C1), wspec(C2), wspec(C2)],
            out_specs=pl.BlockSpec((None, None, 1, 2 * tf),
                                   lambda b, f, r: (b, f, 0, 0)),
            out_shape=jax.ShapeDtypeStruct((N, n_freq, 1, 2 * tf), jnp.float32),
            scratch_shapes=[pltpu.VMEM((1, 2 * tf), jnp.float32)],
            compiler_params=pltpu.CompilerParams(
                # TODO(synk): on v7x use pltpu.CORE_PARALLEL on the batch axis to
                # shard the two TensorCores explicitly.
                dimension_semantics=("parallel", "arbitrary", "arbitrary"),
                vmem_limit_bytes=_vmem_limit_bytes()),
        )(x1f, x2f, weights["w1_re"], weights["w1_im"],
          weights["w2_re"], weights["w2_im"])

        # [N, F, 1, 2*tF] -> pooled re/im half-spectra [N, dfp] each.
        spec = spec.reshape(N, n_freq, 2, tf).transpose(0, 2, 1, 3).reshape(N, 2, dfp)
        p_re = spec[:, 0, :dh]
        p_im = spec[:, 1, :dh]
        # Inverse half-spectrum DFT as one batched XLA matmul (moved out of kernel).
        return p_re @ weights["winv_re"] + p_im @ weights["winv_im"]        # [N, d]

    # ---- sum_pool=False -----------------------------------------------------
    # TODO(synk): for very large output_dim the [dfp, dop] inverse-DFT weights need
    # their own frequency/output-column grid axes to fit v7x's 64 MiB VMEM.
    def cspec(shape):
        return pl.BlockSpec(shape, lambda b, r: (0, 0),
                            pipeline_mode=pl.Buffered(1))   # fetched once

    out = pl.pallas_call(
        _cbp_nopool_kernel,
        grid=(N, n_row),
        in_specs=x_specs + [cspec((C1, dfp)), cspec((C1, dfp)),
                            cspec((C2, dfp)), cspec((C2, dfp)),
                            cspec((dfp, dop)), cspec((dfp, dop))],
        out_specs=pl.BlockSpec((None, tr, dop), lambda b, r: (b, r, 0)),
        out_shape=jax.ShapeDtypeStruct((N, hwp, dop), jnp.float32),
        compiler_params=pltpu.CompilerParams(
            dimension_semantics=("parallel", "parallel"),
            vmem_limit_bytes=_vmem_limit_bytes()),
    )(x1f, x2f, weights["w1_re"], weights["w1_im"],
      weights["w2_re"], weights["w2_im"],
      weights["winv_re_p"], weights["winv_im_p"])

    cbp = out[:, :HW, :d].reshape(N, H, W, d)
    return jnp.transpose(cbp, (0, 3, 1, 2))       # NCHW, like permute(0, 3, 1, 2)


# ---------------------------------------------------------------------------
# Helpers / reference
# ---------------------------------------------------------------------------

def make_sketch(key, input_dim, output_dim):
    """Dense count-sketch matrix, same semantics as generate_sketch_matrix."""
    kh, ks = jax.random.split(key)
    rand_h = jax.random.randint(kh, (input_dim,), 0, output_dim)
    rand_s = (2 * jax.random.randint(ks, (input_dim,), 0, 2) - 1).astype(jnp.float32)
    sketch = jnp.zeros((input_dim, output_dim), jnp.float32)
    sketch = sketch.at[jnp.arange(input_dim), rand_h].set(rand_s)
    return sketch


def _reference(x1, x2, sk1, sk2, d, sum_pool=True):
    # Pure-JAX reference using real FFTs (mirrors the torch forward).
    y1 = jnp.einsum('nchw,cd->nhwd', x1.astype(jnp.float32), sk1)
    y2 = jnp.einsum('nchw,cd->nhwd', x2.astype(jnp.float32), sk2)
    f1 = jnp.fft.rfft(y1, axis=-1)
    f2 = jnp.fft.rfft(y2, axis=-1)
    cbp = jnp.fft.irfft(f1 * f2, n=d, axis=-1) * d
    if sum_pool:
        return cbp.sum(axis=(1, 2))
    return jnp.transpose(cbp, (0, 3, 1, 2))


if __name__ == "__main__":
    key = jax.random.PRNGKey(0)
    k1, k2, k3, k4 = jax.random.split(key, 4)

    N, H, W = 2, 8, 8
    C1, C2, D = 8, 16, 32

    x1 = jax.random.normal(k1, (N, C1, H, W), dtype=jnp.float32)
    x2 = jax.random.normal(k2, (N, C2, H, W), dtype=jnp.float32)

    sketch1 = make_sketch(k3, C1, D)   # deterministic "parameters"
    sketch2 = make_sketch(k4, C2, D)

    # Precomputed once (module init), not per forward call.
    weights = make_cbp_weights(sketch1, sketch2, D)

    # sum_pool=True path
    out = compact_bilinear_pooling(x1, x2, weights, sum_pool=True)
    out = jax.block_until_ready(out)
    ref = _reference(x1, x2, sketch1, sketch2, D, sum_pool=True)
    rel_err = float(jnp.max(jnp.abs(out - ref)) / (jnp.max(jnp.abs(ref)) + 1e-6))
    assert out.shape == (N, D), out.shape
    assert rel_err < 4e-2, f"relative error too large: {rel_err}"

    # sum_pool=False path
    out2 = compact_bilinear_pooling(x1, x2, weights, sum_pool=False)
    out2 = jax.block_until_ready(out2)
    ref2 = _reference(x1, x2, sketch1, sketch2, D, sum_pool=False)
    rel_err2 = float(jnp.max(jnp.abs(out2 - ref2)) / (jnp.max(jnp.abs(ref2)) + 1e-6))
    assert out2.shape == (N, D, H, W), out2.shape
    assert rel_err2 < 4e-2, f"relative error too large (no pool): {rel_err2}"

    print("KERNEL_OK")
</pallas_src>

<mosaic_0001>
module attributes {stable_mosaic.version = 11 : i64} {
  func.func @_cbp_pooled_spectrum_kernel(%arg0: i32, %arg1: i32, %arg2: i32, %arg3: memref<1x64x8xbf16, #tpu.memory_space<vmem>>, %arg4: memref<1x64x16xbf16, #tpu.memory_space<vmem>>, %arg5: memref<8x128xbf16, #tpu.memory_space<vmem>>, %arg6: memref<8x128xbf16, #tpu.memory_space<vmem>>, %arg7: memref<16x128xbf16, #tpu.memory_space<vmem>>, %arg8: memref<16x128xbf16, #tpu.memory_space<vmem>>, %arg9: memref<1x1x1x256xf32, #tpu.memory_space<vmem>>, %arg10: memref<1x256xf32, #tpu.memory_space<vmem>>) attributes {dimension_semantics = [#tpu.dimension_semantics<parallel>, #tpu.dimension_semantics<arbitrary>, #tpu.dimension_semantics<arbitrary>], iteration_bounds = array<i64: 2, 1, 1>, scalar_prefetch = 0 : i64, scratch_operands = 1 : i64, tpu.core_type = #tpu.core_type<tc>, window_params = [{transform_indices = @transform_0, window_bounds = array<i64: 1, 64, 8>}, {transform_indices = @transform_1, window_bounds = array<i64: 1, 64, 16>}, {pipeline_mode = #tpu.pipeline_mode<synchronous>, transform_indices = @transform_2, window_bounds = array<i64: 8, 128>}, {pipeline_mode = #tpu.pipeline_mode<synchronous>, transform_indices = @transform_3, window_bounds = array<i64: 8, 128>}, {pipeline_mode = #tpu.pipeline_mode<synchronous>, transform_indices = @transform_4, window_bounds = array<i64: 16, 128>}, {pipeline_mode = #tpu.pipeline_mode<synchronous>, transform_indices = @transform_5, window_bounds = array<i64: 16, 128>}, {transform_indices = @transform_6, window_bounds = array<i64: 1, 1, 1, 256>}]} {
    %c0_i32 = arith.constant 0 : i32
    %0 = arith.cmpi eq, %arg2, %c0_i32 : i32
    %1 = arith.extui %0 : i1 to i32
    %c0_i32_0 = arith.constant 0 : i32
    %2 = arith.cmpi ne, %1, %c0_i32_0 : i32
    scf.if %2 {
      %cst_28 = arith.constant 0.000000e+00 : f32
      %34 = vector.broadcast %cst_28 : f32 to vector<1x256xf32>
      %c0_29 = arith.constant 0 : index
      %c0_30 = arith.constant 0 : index
      %35 = vector.load %arg10[%c0_29, %c0_30] : memref<1x256xf32, #tpu.memory_space<vmem>>, vector<1x256xf32>
      tpu.vector_store %arg10[%c0_29, %c0_30], %34 {strides = array<i32>} : memref<1x256xf32, #tpu.memory_space<vmem>>, vector<1x256xf32>,
    } else {
    }
    %c0 = arith.constant 0 : index
    %c0_1 = arith.constant 0 : index
    %c0_2 = arith.constant 0 : index
    %3 = vector.load %arg3[%c0, %c0_1, %c0_2] : memref<1x64x8xbf16, #tpu.memory_space<vmem>>, vector<1x64x8xbf16>
    %4 = vector.shape_cast %3 : vector<1x64x8xbf16> to vector<64x8xbf16>
    %c0_3 = arith.constant 0 : index
    %c0_4 = arith.constant 0 : index
    %c0_5 = arith.constant 0 : index
    %5 = vector.load %arg4[%c0_3, %c0_4, %c0_5] : memref<1x64x16xbf16, #tpu.memory_space<vmem>>, vector<1x64x16xbf16>
    %6 = vector.shape_cast %5 : vector<1x64x16xbf16> to vector<64x16xbf16>
    %c0_6 = arith.constant 0 : index
    %c0_7 = arith.constant 0 : index
    %7 = vector.load %arg5[%c0_6, %c0_7] : memref<8x128xbf16, #tpu.memory_space<vmem>>, vector<8x128xbf16>
    %cst = arith.constant dense<0.000000e+00> : vector<64x128xf32>
    %8 = tpu.matmul %4, %7, %cst {dimension_numbers = #tpu.dot_dimension_numbers<[1], [0], [0], [1], [0, 0, 1, 1], [], []>} : vector<64x8xbf16>, vector<8x128xbf16>, vector<64x128xf32> -> vector<64x128xf32>
    %c0_8 = arith.constant 0 : index
    %c0_9 = arith.constant 0 : index
    %9 = vector.load %arg6[%c0_8, %c0_9] : memref<8x128xbf16, #tpu.memory_space<vmem>>, vector<8x128xbf16>
    %cst_10 = arith.constant dense<0.000000e+00> : vector<64x128xf32>
    %10 = tpu.matmul %4, %9, %cst_10 {dimension_numbers = #tpu.dot_dimension_numbers<[1], [0], [0], [1], [0, 0, 1, 1], [], []>} : vector<64x8xbf16>, vector<8x128xbf16>, vector<64x128xf32> -> vector<64x128xf32>
    %c0_11 = arith.constant 0 : index
    %c0_12 = arith.constant 0 : index
    %11 = vector.load %arg7[%c0_11, %c0_12] : memref<16x128xbf16, #tpu.memory_space<vmem>>, vector<16x128xbf16>
    %cst_13 = arith.constant dense<0.000000e+00> : vector<64x128xf32>
    %12 = tpu.matmul %6, %11, %cst_13 {dimension_numbers = #tpu.dot_dimension_numbers<[1], [0], [0], [1], [0, 0, 1, 1], [], []>} : vector<64x16xbf16>, vector<16x128xbf16>, vector<64x128xf32> -> vector<64x128xf32>
    %c0_14 = arith.constant 0 : index
    %c0_15 = arith.constant 0 : index
    %13 = vector.load %arg8[%c0_14, %c0_15] : memref<16x128xbf16, #tpu.memory_space<vmem>>, vector<16x128xbf16>
    %cst_16 = arith.constant dense<0.000000e+00> : vector<64x128xf32>
    %14 = tpu.matmul %6, %13, %cst_16 {dimension_numbers = #tpu.dot_dimension_numbers<[1], [0], [0], [1], [0, 0, 1, 1], [], []>} : vector<64x16xbf16>, vector<16x128xbf16>, vector<64x128xf32> -> vector<64x128xf32>
    %15 = arith.mulf %8, %12 : vector<64x128xf32>
    %16 = arith.mulf %10, %14 : vector<64x128xf32>
    %17 = arith.subf %15, %16 : vector<64x128xf32>
    %18 = arith.mulf %8, %14 : vector<64x128xf32>
    %19 = arith.mulf %10, %12 : vector<64x128xf32>
    %20 = arith.addf %18, %19 : vector<64x128xf32>
    %c0_17 = arith.constant 0 : index
    %c0_18 = arith.constant 0 : index
    %21 = vector.load %arg10[%c0_17, %c0_18] : memref<1x256xf32, #tpu.memory_space<vmem>>, vector<1x128xf32>
    %cst_19 = arith.constant dense<0.000000e+00> : vector<128xf32>
    %22 = vector.multi_reduction <add>, %17, %cst_19 [0] : vector<64x128xf32> to vector<128xf32>
    %23 = vector.shape_cast %22 : vector<128xf32> to vector<1x128xf32>
    %24 = arith.addf %21, %23 : vector<1x128xf32>
    %c0_20 = arith.constant 0 : index
    %c0_21 = arith.constant 0 : index
    %25 = vector.load %arg10[%c0_20, %c0_21] : memref<1x256xf32, #tpu.memory_space<vmem>>, vector<1x128xf32>
    tpu.vector_store %arg10[%c0_20, %c0_21], %24 {strides = array<i32>} : memref<1x256xf32, #tpu.memory_space<vmem>>, vector<1x128xf32>,
    %c0_22 = arith.constant 0 : index
    %c128 = arith.constant 128 : index
    %26 = vector.load %arg10[%c0_22, %c128] : memref<1x256xf32, #tpu.memory_space<vmem>>, vector<1x128xf32>
    %cst_23 = arith.constant dense<0.000000e+00> : vector<128xf32>
    %27 = vector.multi_reduction <add>, %20, %cst_23 [0] : vector<64x128xf32> to vector<128xf32>
    %28 = vector.shape_cast %27 : vector<128xf32> to vector<1x128xf32>
    %29 = arith.addf %26, %28 : vector<1x128xf32>
    %c0_24 = arith.constant 0 : index
    %c128_25 = arith.constant 128 : index
    %30 = vector.load %arg10[%c0_24, %c128_25] : memref<1x256xf32, #tpu.memory_space<vmem>>, vector<1x128xf32>
    tpu.vector_store %arg10[%c0_24, %c128_25], %29 {strides = array<i32>} : memref<1x256xf32, #tpu.memory_space<vmem>>, vector<1x128xf32>,
    %c0_i32_26 = arith.constant 0 : i32
    %31 = arith.cmpi eq, %arg2, %c0_i32_26 : i32
    %32 = arith.extui %31 : i1 to i32
    %c0_i32_27 = arith.constant 0 : i32
    %33 = arith.cmpi ne, %32, %c0_i32_27 : i32
    scf.if %33 {
      %c0_28 = arith.constant 0 : index
      %c0_29 = arith.constant 0 : index
      %34 = vector.load %arg10[%c0_28, %c0_29] : memref<1x256xf32, #tpu.memory_space<vmem>>, vector<1x256xf32>
      %c0_30 = arith.constant 0 : index
      %c0_31 = arith.constant 0 : index
      %c0_32 = arith.constant 0 : index
      %c0_33 = arith.constant 0 : index
      %35 = vector.load %arg9[%c0_30, %c0_31, %c0_32, %c0_33] : memref<1x1x1x256xf32, #tpu.memory_space<vmem>>, vector<1x1x1x256xf32>
      %36 = vector.shape_cast %35 : vector<1x1x1x256xf32> to vector<1x256xf32>
      %37 = vector.shape_cast %34 : vector<1x256xf32> to vector<1x1x1x256xf32>
      tpu.vector_store %arg9[%c0_30, %c0_31, %c0_32, %c0_33], %37 {strides = array<i32>} : memref<1x1x1x256xf32, #tpu.memory_space<vmem>>, vector<1x1x1x256xf32>,
    } else {
    }
    return
  }
  func.func @transform_0(%arg0: i32, %arg1: i32, %arg2: i32) -> (i32, i32, i32) {
    %c0_i32 = arith.constant 0 : i32
    %c0_i32_0 = arith.constant 0 : i32
    return %arg0, %arg2, %c0_i32 : i32, i32, i32
  }
  func.func @transform_1(%arg0: i32, %arg1: i32, %arg2: i32) -> (i32, i32, i32) {
    %c0_i32 = arith.constant 0 : i32
    %c0_i32_0 = arith.constant 0 : i32
    return %arg0, %arg2, %c0_i32 : i32, i32, i32
  }
  func.func @transform_2(%arg0: i32, %arg1: i32, %arg2: i32) -> (i32, i32) {
    %c0_i32 = arith.constant 0 : i32
    %c0_i32_0 = arith.constant 0 : i32
    return %c0_i32, %arg1 : i32, i32
  }
  func.func @transform_3(%arg0: i32, %arg1: i32, %arg2: i32) -> (i32, i32) {
    %c0_i32 = arith.constant 0 : i32
    %c0_i32_0 = arith.constant 0 : i32
    return %c0_i32, %arg1 : i32, i32
  }
  func.func @transform_4(%arg0: i32, %arg1: i32, %arg2: i32) -> (i32, i32) {
    %c0_i32 = arith.constant 0 : i32
    %c0_i32_0 = arith.constant 0 : i32
    return %c0_i32, %arg1 : i32, i32
  }
  func.func @transform_5(%arg0: i32, %arg1: i32, %arg2: i32) -> (i32, i32) {
    %c0_i32 = arith.constant 0 : i32
    %c0_i32_0 = arith.constant 0 : i32
    return %c0_i32, %arg1 : i32, i32
  }
  func.func @transform_6(%arg0: i32, %arg1: i32, %arg2: i32) -> (i32, i32, i32, i32) {
    %c0_i32 = arith.constant 0 : i32
    %c0_i32_0 = arith.constant 0 : i32
    %c0_i32_1 = arith.constant 0 : i32
    return %arg0, %arg1, %c0_i32, %c0_i32_0 : i32, i32, i32, i32
  }
}

</mosaic_0001>

<llo_original>
// kernel: compact_bilinear_pooling.1
$region0: #{compact_bilinear_pooling.1}
  #allocation0 [shape = 'u32[]', space=smem, size = 0x4, offset = 0x4, fixed_abs, tag = 'smem constant byte address 0x4 - core index']
  #allocation1 [shape = 'u32[144,128]{1,0:T(1,128)}', space=vmem, size = 0x12000, scoped, tag = 'internal scratch']
  #allocation2 [shape = 'f32[1,256]{1,0:T(1,128)}', space=vmem, size = 0x400, scoped, tag = 'scratch operand']
  %s0 = inlined_call_operand.hbm [shape: bf16[2,64,8], index: 0, kind: input, shape index: {}]
  %s1 = inlined_call_operand.hbm [shape: bf16[2,64,16], index: 1, kind: input, shape index: {}]
  %s2 = inlined_call_operand.hbm [shape: bf16[8,128], index: 2, kind: input, shape index: {}]
  %s3 = inlined_call_operand.hbm [shape: bf16[8,128], index: 3, kind: input, shape index: {}]
  %s4 = inlined_call_operand.hbm [shape: bf16[16,128], index: 4, kind: input, shape index: {}]
  %s5 = inlined_call_operand.hbm [shape: bf16[16,128], index: 5, kind: input, shape index: {}]
  %s6 = inlined_call_operand.hbm [shape: f32[2,1,1,256], index: 6, kind: output, shape index: {}]
  %s7 = sld [smem:[#allocation0]]
  $region89: #{compact_bilinear_pooling.1} parent=0
    _
  %s9 = ssub.s32 1, %s7
  %s10 = scalar_select 0, %s9, %s7
  $region1: #{compact_bilinear_pooling.1} parent=0
    #allocation3 [shape = 'u8[32768]{0}', space=vmem, size = 0x8000, scoped, tag = 'input window, operand 0']
    #allocation4 [shape = 's32[2]{0}', space=sflag, size = 0x8, scoped, tag = 'scoped memory for compact_bilinear_pooling.1']
    #allocation5 [shape = 's32[2]{0}', space=sflag, size = 0x8, scoped, tag = 'scoped memory for compact_bilinear_pooling.1']
    #allocation6 [shape = 'u8[32768]{0}', space=vmem, size = 0x8000, scoped, tag = 'input window, operand 1']
    #allocation7 [shape = 's32[2]{0}', space=sflag, size = 0x8, scoped, tag = 'scoped memory for compact_bilinear_pooling.1']
    #allocation8 [shape = 'u8[2048]{0}', space=vmem, size = 0x800, scoped, tag = 'input window, operand 2, single buffered']
    #allocation9 [shape = 'u8[2048]{0}', space=vmem, size = 0x800, scoped, tag = 'input window, operand 3, single buffered']
    #allocation10 [shape = 's32[1]{0}', space=sflag, size = 0x4, scoped, tag = 'scoped memory for compact_bilinear_pooling.1']
    #allocation11 [shape = 'u8[4096]{0}', space=vmem, size = 0x1000, scoped, tag = 'input window, operand 4, single buffered']
    #allocation12 [shape = 'u8[4096]{0}', space=vmem, size = 0x1000, scoped, tag = 'input window, operand 5, single buffered']
    #allocation13 [shape = 's32[1]{0}', space=sflag, size = 0x4, scoped, tag = 'scoped memory for compact_bilinear_pooling.1']
    #allocation14 [shape = 'u8[2048]{0}', space=vmem, size = 0x800, scoped, tag = 'output window, operand 0']
    %11 = vsyncpa [#allocation4], 0
    %s12 = scalar_lea.sflag [#allocation4], 1
    %13 = vsyncpa %s12, 0
    %14 = vsyncpa [#allocation7], 0
    %s15 = scalar_lea.sflag [#allocation7], 1
    %16 = vsyncpa %s15, 0
    %17 = vsyncpa [#allocation10], 0
    %18 = vsyncpa [#allocation13], 0
    %19 = vsyncpa [#allocation5], 0
    %s20 = scalar_lea.sflag [#allocation5], 1
    %21 = vsyncpa %s20, 0
    loop: start=0, step=1, limit=4
    $region2: #{compact_bilinear_pooling.1} parent=1 // loop_pre_header
      _
    $region3: #{compact_bilinear_pooling.1} parent=1 // loop_header
      %s23 = sphi 0, %s27
      %p24 = scmp.ge.s32.totalorder %s23, 4
      %s30 = sphi 0, %s49
      %s31 = sphi 0, %s45
      %s32 = sphi 0, %s41
      %s33 = sphi 0, %s30
      %s34 = sphi 0, %s31
      %s35 = sphi 0, %s32
      %s36 = sphi 0, %s33
      %s37 = sphi 0, %s34
      %s38 = sphi 0, %s35
      %s54 = sphi 0, %s56
      %s57 = sphi 0, %s54
      %s58 = sphi 0, %s57
      %s74 = sphi 0, %s58
      %s82 = sphi 0, %s84
      %s85 = sphi 0, %s82
      %s86 = sphi 0, %s85
      %s102 = sphi 0, %s86
      %s108 = sphi 0, %s110
      %s111 = sphi 0, %s108
      %s112 = sphi 0, %s111
      %s128 = sphi 0, %s112
      %s134 = sphi 0, %s136
      %s137 = sphi 0, %s134
      %s138 = sphi 0, %s137
      %s154 = sphi 0, %s138
      %s160 = sphi 0, %s162
      %s163 = sphi 0, %s160
      %s164 = sphi 0, %s163
      %s180 = sphi 0, %s164
      %s186 = sphi 0, %s188
      %s189 = sphi 0, %s186
      %s190 = sphi 0, %s189
      %s206 = sphi 0, %s190
      %s214 = sphi 0, %s216
      %s217 = sphi 0, %s214
      %s218 = sphi 0, %s217
      %s234 = sphi 0, %s218
    $region4: #{compact_bilinear_pooling.1} parent=1 // loop_header_branch
      %26 = sbr.rel (%p24) target = $region8
    $region5: #{compact_bilinear_pooling.1} parent=1 // loop_body
      %s28 = ssub.s32 %s23, 1
      %s29 = ssub.s32 %s23, 2
      %s39 = sadd.s32 1, %s32
      %p40 = scmp.ge.s32.totalorder %s39, 1
      %s41 = scalar_select %p40, 0, %s39
      %s42 = sadd.s32 1, %s31
      %s43 = scalar_select %p40, %s42, %s31
      %p44 = scmp.ge.s32.totalorder %s43, 1
      %s45 = scalar_select %p44, 0, %s43
      %s46 = sadd.s32 1, %s30
      %s47 = scalar_select %p44, %s46, %s30
      %p48 = scmp.ge.s32.totalorder %s47, 2
      %s49 = scalar_select %p48, 0, %s47
      %s50 = ssub.s32 %s30, %s49
      %s51 = ssub.s32 %s32, %s41
      %s52 = sor.u32 %s50, %s51
      %p53 = scmp.eq.s32.totalorder %s52, 0
      %s55 = sadd.s32 %s54, 1
      %s56 = scalar_select %p53, %s54, %s55
      %p59 = pneg %p53
      %p60 = scmp.eq.s32.totalorder %s23, 1
      %p61 = por %p59, %p60
      %p62 = scmp.ne.s32.totalorder %s54, %s57
      %p63 = scmp.eq.s32.totalorder %s23, 0
      %p64 = por %p62, %p63
      %p65 = scmp.ne.s32.totalorder %s54, %s57
      %p66 = scmp.eq.s32.totalorder %s28, 1
      %p67 = por %p65, %p66
      %p68 = scmp.ne.s32.totalorder %s57, %s58
      %p69 = scmp.eq.s32.totalorder %s28, 0
      %p70 = por %p68, %p69
      %p71 = scmp.ne.s32.totalorder %s57, %s58
      %p72 = scmp.eq.s32.totalorder %s29, 1
      %p73 = por %p71, %p72
      %p75 = scmp.ne.s32.totalorder %s58, %s74
      %p76 = scmp.eq.s32.totalorder %s29, 0
      %p77 = por %p75, %p76
      %s78 = ssub.s32 %s30, %s49
      %s79 = ssub.s32 %s32, %s41
      %s80 = sor.u32 %s78, %s79
      %p81 = scmp.eq.s32.totalorder %s80, 0
      %s83 = sadd.s32 %s82, 1
      %s84 = scalar_select %p81, %s82, %s83
      %p87 = pneg %p81
      %p88 = scmp.eq.s32.totalorder %s23, 1
      %p89 = por %p87, %p88
      %p90 = scmp.ne.s32.totalorder %s82, %s85
      %p91 = scmp.eq.s32.totalorder %s23, 0
      %p92 = por %p90, %p91
      %p93 = scmp.ne.s32.totalorder %s82, %s85
      %p94 = scmp.eq.s32.totalorder %s28, 1
      %p95 = por %p93, %p94
      %p96 = scmp.ne.s32.totalorder %s85, %s86
      %p97 = scmp.eq.s32.totalorder %s28, 0
      %p98 = por %p96, %p97
      %p99 = scmp.ne.s32.totalorder %s85, %s86
      %p100 = scmp.eq.s32.totalorder %s29, 1
      %p101 = por %p99, %p100
      %p103 = scmp.ne.s32.totalorder %s86, %s102
      %p104 = scmp.eq.s32.totalorder %s29, 0
      %p105 = por %p103, %p104
      %s106 = ssub.s32 %s31, %s45
      %p107 = scmp.eq.s32.totalorder %s106, 0
      %s109 = sadd.s32 %s108, 1
      %s110 = scalar_select %p107, %s108, %s109
      %p113 = pneg %p107
      %p114 = scmp.eq.s32.totalorder %s23, 1
      %p115 = por %p113, %p114
      %p116 = scmp.ne.s32.totalorder %s108, %s111
      %p117 = scmp.eq.s32.totalorder %s23, 0
      %p118 = por %p116, %p117
      %p119 = scmp.ne.s32.totalorder %s108, %s111
      %p120 = scmp.eq.s32.totalorder %s28, 1
      %p121 = por %p119, %p120
      %p122 = scmp.ne.s32.totalorder %s111, %s112
      %p123 = scmp.eq.s32.totalorder %s28, 0
      %p124 = por %p122, %p123
      %p125 = scmp.ne.s32.totalorder %s111, %s112
      %p126 = scmp.eq.s32.totalorder %s29, 1
      %p127 = por %p125, %p126
      %p129 = scmp.ne.s32.totalorder %s112, %s128
      %p130 = scmp.eq.s32.totalorder %s29, 0
      %p131 = por %p129, %p130
      %s132 = ssub.s32 %s31, %s45
      %p133 = scmp.eq.s32.totalorder %s132, 0
      %s135 = sadd.s32 %s134, 1
      %s136 = scalar_select %p133, %s134, %s135
      %p139 = pneg %p133
      %p140 = scmp.eq.s32.totalorder %s23, 1
      %p141 = por %p139, %p140
      %p142 = scmp.ne.s32.totalorder %s134, %s137
      %p143 = scmp.eq.s32.totalorder %s23, 0
      %p144 = por %p142, %p143
      %p145 = scmp.ne.s32.totalorder %s134, %s137
      %p146 = scmp.eq.s32.totalorder %s28, 1
      %p147 = por %p145, %p146
      %p148 = scmp.ne.s32.totalorder %s137, %s138
      %p149 = scmp.eq.s32.totalorder %s28, 0
      %p150 = por %p148, %p149
      %p151 = scmp.ne.s32.totalorder %s137, %s138
      %p152 = scmp.eq.s32.totalorder %s29, 1
      %p153 = por %p151, %p152
      %p155 = scmp.ne.s32.totalorder %s138, %s154
      %p156 = scmp.eq.s32.totalorder %s29, 0
      %p157 = por %p155, %p156
      %s158 = ssub.s32 %s31, %s45
      %p159 = scmp.eq.s32.totalorder %s158, 0
      %s161 = sadd.s32 %s160, 1
      %s162 = scalar_select %p159, %s160, %s161
      %p165 = pneg %p159
      %p166 = scmp.eq.s32.totalorder %s23, 1
      %p167 = por %p165, %p166
      %p168 = scmp.ne.s32.totalorder %s160, %s163
      %p169 = scmp.eq.s32.totalorder %s23, 0
      %p170 = por %p168, %p169
      %p171 = scmp.ne.s32.totalorder %s160, %s163
      %p172 = scmp.eq.s32.totalorder %s28, 1
      %p173 = por %p171, %p172
      %p174 = scmp.ne.s32.totalorder %s163, %s164
      %p175 = scmp.eq.s32.totalorder %s28, 0
      %p176 = por %p174, %p175
      %p177 = scmp.ne.s32.totalorder %s163, %s164
      %p178 = scmp.eq.s32.totalorder %s29, 1
      %p179 = por %p177, %p178
      %p181 = scmp.ne.s32.totalorder %s164, %s180
      %p182 = scmp.eq.s32.totalorder %s29, 0
      %p183 = por %p181, %p182
      %s184 = ssub.s32 %s31, %s45
      %p185 = scmp.eq.s32.totalorder %s184, 0
      %s187 = sadd.s32 %s186, 1
      %s188 = scalar_select %p185, %s186, %s187
      %p191 = pneg %p185
      %p192 = scmp.eq.s32.totalorder %s23, 1
      %p193 = por %p191, %p192
      %p194 = scmp.ne.s32.totalorder %s186, %s189
      %p195 = scmp.eq.s32.totalorder %s23, 0
      %p196 = por %p194, %p195
      %p197 = scmp.ne.s32.totalorder %s186, %s189
      %p198 = scmp.eq.s32.totalorder %s28, 1
      %p199 = por %p197, %p198
      %p200 = scmp.ne.s32.totalorder %s189, %s190
      %p201 = scmp.eq.s32.totalorder %s28, 0
      %p202 = por %p200, %p201
      %p203 = scmp.ne.s32.totalorder %s189, %s190
      %p204 = scmp.eq.s32.totalorder %s29, 1
      %p205 = por %p203, %p204
      %p207 = scmp.ne.s32.totalorder %s190, %s206
      %p208 = scmp.eq.s32.totalorder %s29, 0
      %p209 = por %p207, %p208
      %s210 = ssub.s32 %s30, %s49
      %s211 = ssub.s32 %s31, %s45
      %s212 = sor.u32 %s210, %s211
      %p213 = scmp.eq.s32.totalorder %s212, 0
      %s215 = sadd.s32 %s214, 1
      %s216 = scalar_select %p213, %s214, %s215
      %p219 = pneg %p213
      %p220 = scmp.eq.s32.totalorder %s23, 1
      %p221 = por %p219, %p220
      %p222 = scmp.ne.s32.totalorder %s214, %s217
      %p223 = scmp.eq.s32.totalorder %s23, 0
      %p224 = por %p222, %p223
      %p225 = scmp.ne.s32.totalorder %s214, %s217
      %p226 = scmp.eq.s32.totalorder %s28, 1
      %p227 = por %p225, %p226
      %p228 = scmp.ne.s32.totalorder %s217, %s218
      %p229 = scmp.eq.s32.totalorder %s28, 0
      %p230 = por %p228, %p229
      %p231 = scmp.ne.s32.totalorder %s217, %s218
      %p232 = scmp.eq.s32.totalorder %s29, 1
      %p233 = por %p231, %p232
      %p235 = scmp.ne.s32.totalorder %s218, %s234
      %p236 = scmp.eq.s32.totalorder %s29, 0
      %p237 = por %p235, %p236
      %p238 = scmp.le.s32.totalorder 1, %s23
      %p239 = scmp.lt.s32.totalorder %s23, 3
      %p240 = pnand %p238, %p239
      %p241 = pneg %p240
      // Predicated region
      $region9: #{compact_bilinear_pooling.1} parent=5 // pred_check
        _
      $region10: #{compact_bilinear_pooling.1} parent=5 // pred_check_branch
        %243 = sbr.rel (%p240) target = $region12
      $region11: #{compact_bilinear_pooling.1} parent=5 // pred_region
        %s244 = ssub.s32 %s23, 1
        // Predicated region
        $region13: #{compact_bilinear_pooling.1} parent=11 // pred_check
          %p245 = pneg %p124
        $region14: #{compact_bilinear_pooling.1} parent=11 // pred_check_branch
          %247 = sbr.rel (%p245) target = $region16
        $region15: #{compact_bilinear_pooling.1} parent=11 // pred_region
          %s249 = ssub.s32 64, 64
          %250 = vsyncadd [#allocation7], %s249
          %s251 = smul.addr %s34, 64
          %s252 = scalar_lea.hbm %s2, %s251
          %s254 = sshll.u32 [#allocation8], 4
          %s255 = int_to_ptr.vmem [resolvable:$true] %s254
          %257 = dma.hbm_to_vmem [thread:$0]  %s252, 64, %s255, [#allocation7]
        $region16: #{compact_bilinear_pooling.1} parent=11 // pred_fallthru
          _
        // Predicated region
        $region17: #{compact_bilinear_pooling.1} parent=11 // pred_check
          %p258 = pneg %p150
        $region18: #{compact_bilinear_pooling.1} parent=11 // pred_check_branch
          %260 = sbr.rel (%p258) target = $region20
        $region19: #{compact_bilinear_pooling.1} parent=11 // pred_region
          %s262 = ssub.s32 64, 64
          %263 = vsyncadd [#allocation10], %s262
          %s264 = smul.addr %s34, 64
          %s265 = scalar_lea.hbm %s3, %s264
          %s267 = sshll.u32 [#allocation9], 4
          %s268 = int_to_ptr.vmem [resolvable:$true] %s267
          %270 = dma.hbm_to_vmem [thread:$0]  %s265, 64, %s268, [#allocation10]
        $region20: #{compact_bilinear_pooling.1} parent=11 // pred_fallthru
          _
        // Predicated region
        $region21: #{compact_bilinear_pooling.1} parent=11 // pred_check
          %p271 = pneg %p176
        $region22: #{compact_bilinear_pooling.1} parent=11 // pred_check_branch
          %273 = sbr.rel (%p271) target = $region24
        $region23: #{compact_bilinear_pooling.1} parent=11 // pred_region
          %s275 = ssub.s32 128, 128
          %276 = vsyncadd [#allocation10], %s275
          %s277 = smul.addr %s34, 64
          %s278 = scalar_lea.hbm %s4, %s277
          %s279 = sshll.u32 [#allocation11], 4
          %s280 = int_to_ptr.vmem [resolvable:$true] %s279
          %285 = dma.hbm_to_vmem [thread:$0]  %s278, 128, %s280, [#allocation10], 64, 64, 4
        $region24: #{compact_bilinear_pooling.1} parent=11 // pred_fallthru
          _
        // Predicated region
        $region25: #{compact_bilinear_pooling.1} parent=11 // pred_check
          %p286 = pneg %p202
        $region26: #{compact_bilinear_pooling.1} parent=11 // pred_check_branch
          %288 = sbr.rel (%p286) target = $region28
        $region27: #{compact_bilinear_pooling.1} parent=11 // pred_region
          %s290 = ssub.s32 128, 128
          %291 = vsyncadd [#allocation13], %s290
          %s292 = smul.addr %s34, 64
          %s293 = scalar_lea.hbm %s5, %s292
          %s294 = sshll.u32 [#allocation12], 4
          %s295 = int_to_ptr.vmem [resolvable:$true] %s294
          %300 = dma.hbm_to_vmem [thread:$0]  %s293, 128, %s295, [#allocation13], 64, 64, 4
        $region28: #{compact_bilinear_pooling.1} parent=11 // pred_fallthru
          _
      $region12: #{compact_bilinear_pooling.1} parent=5 // pred_fallthru
        _
      %p301 = scmp.lt.s32.totalorder %s23, 2
      // Predicated region
      $region29: #{compact_bilinear_pooling.1} parent=5 // pred_check
        %p302 = pneg %p301
      $region30: #{compact_bilinear_pooling.1} parent=5 // pred_check_branch
        %304 = sbr.rel (%p302) target = $region32
      $region31: #{compact_bilinear_pooling.1} parent=5 // pred_region
        // Predicated region
        $region33: #{compact_bilinear_pooling.1} parent=31 // pred_check
          %p305 = pneg %p64
        $region34: #{compact_bilinear_pooling.1} parent=31 // pred_check_branch
          %307 = sbr.rel (%p305) target = $region36
        $region35: #{compact_bilinear_pooling.1} parent=31 // pred_region
          %s308 = sand.u32 %s54, 1
          %s309 = scalar_lea.sflag [#allocation4], %s308
          %s310 = sand.u32 %s54, 1
          %s311 = smul.addr %s310, 32
          %s312 = scalar_lea.vmem [#allocation3], %s311
          %s313 = smul.u32 8, %s32
          %s315 = ssub.s32 512, 512
          %316 = vsyncadd %s309, %s315
          %s317 = smul.addr %s30, 8
          %s318 = sadd.s32 %s313, %s317
          %s319 = smul.addr %s318, 64
          %s320 = scalar_lea.hbm %s0, %s319
          %s321 = sshll.u32 %s312, 4
          %s322 = int_to_ptr.vmem [resolvable:$true] %s321
          %327 = dma.hbm_to_vmem [thread:$0]  %s320, 512, %s322, %s309, 64, 64, 4
        $region36: #{compact_bilinear_pooling.1} parent=31 // pred_fallthru
          _
        // Predicated region
        $region37: #{compact_bilinear_pooling.1} parent=31 // pred_check
          %p328 = pneg %p92
        $region38: #{compact_bilinear_pooling.1} parent=31 // pred_check_branch
          %330 = sbr.rel (%p328) target = $region40
        $region39: #{compact_bilinear_pooling.1} parent=31 // pred_region
          %s331 = sand.u32 %s23, 1
          %s332 = scalar_lea.sflag [#allocation7], %s331
          %s333 = sand.u32 %s82, 1
          %s334 = smul.addr %s333, 32
          %s335 = scalar_lea.vmem [#allocation6], %s334
          %s336 = smul.u32 8, %s32
          %s338 = ssub.s32 512, 512
          %339 = vsyncadd %s332, %s338
          %s340 = smul.addr %s30, 8
          %s341 = sadd.s32 %s336, %s340
          %s342 = smul.addr %s341, 64
          %s343 = scalar_lea.hbm %s1, %s342
          %s344 = sshll.u32 %s335, 4
          %s345 = int_to_ptr.vmem [resolvable:$true] %s344
          %350 = dma.hbm_to_vmem [thread:$0]  %s343, 512, %s345, %s332, 64, 64, 4
        $region40: #{compact_bilinear_pooling.1} parent=31 // pred_fallthru
          _
      $region32: #{compact_bilinear_pooling.1} parent=5 // pred_fallthru
        _
      %p351 = scmp.le.s32.totalorder 1, %s23
      %p352 = scmp.lt.s32.totalorder %s23, 3
      %p353 = pnand %p351, %p352
      %p354 = pneg %p353
      // Predicated region
      $region41: #{compact_bilinear_pooling.1} parent=5 // pred_check
        _
      $region42: #{compact_bilinear_pooling.1} parent=5 // pred_check_branch
        %356 = sbr.rel (%p353) target = $region44
      $region43: #{compact_bilinear_pooling.1} parent=5 // pred_region
        %s357 = ssub.s32 %s23, 1
        %s358 = sand.u32 %s57, 1
        %s359 = scalar_lea.sflag [#allocation4], %s358
        %s360 = sand.u32 %s57, 1
        %s361 = smul.addr %s360, 32
        %s362 = scalar_lea.vmem [#allocation3], %s361
        // Predicated region
        $region45: #{compact_bilinear_pooling.1} parent=43 // pred_check
          %p363 = pneg %p70
        $region46: #{compact_bilinear_pooling.1} parent=43 // pred_check_branch
          %365 = sbr.rel (%p363) target = $region48
        $region47: #{compact_bilinear_pooling.1} parent=43 // pred_region
          %366 = dma.done %s359, 512
        $region48: #{compact_bilinear_pooling.1} parent=43 // pred_fallthru
          _
        %s367 = sand.u32 %s28, 1
        %s368 = scalar_lea.sflag [#allocation7], %s367
        %s369 = sand.u32 %s85, 1
        %s370 = smul.addr %s369, 32
        %s371 = scalar_lea.vmem [#allocation6], %s370
        // Predicated region
        $region49: #{compact_bilinear_pooling.1} parent=43 // pred_check
          %p372 = pneg %p98
        $region50: #{compact_bilinear_pooling.1} parent=43 // pred_check_branch
          %374 = sbr.rel (%p372) target = $region52
        $region51: #{compact_bilinear_pooling.1} parent=43 // pred_region
          %375 = dma.done %s368, 512
        $region52: #{compact_bilinear_pooling.1} parent=43 // pred_fallthru
          _
        // Predicated region
        $region53: #{compact_bilinear_pooling.1} parent=43 // pred_check
          %p376 = pneg %p124
        $region54: #{compact_bilinear_pooling.1} parent=43 // pred_check_branch
          %378 = sbr.rel (%p376) target = $region56
        $region55: #{compact_bilinear_pooling.1} parent=43 // pred_region
          %379 = dma.done [#allocation7], 64
        $region56: #{compact_bilinear_pooling.1} parent=43 // pred_fallthru
          _
        // Predicated region
        $region57: #{compact_bilinear_pooling.1} parent=43 // pred_check
          %p380 = pneg %p150
        $region58: #{compact_bilinear_pooling.1} parent=43 // pred_check_branch
          %382 = sbr.rel (%p380) target = $region60
        $region59: #{compact_bilinear_pooling.1} parent=43 // pred_region
          %383 = dma.done [#allocation10], 64
        $region60: #{compact_bilinear_pooling.1} parent=43 // pred_fallthru
          _
        // Predicated region
        $region61: #{compact_bilinear_pooling.1} parent=43 // pred_check
          %p384 = pneg %p176
        $region62: #{compact_bilinear_pooling.1} parent=43 // pred_check_branch
          %386 = sbr.rel (%p384) target = $region64
        $region63: #{compact_bilinear_pooling.1} parent=43 // pred_region
          %387 = dma.done [#allocation10], 128
        $region64: #{compact_bilinear_pooling.1} parent=43 // pred_fallthru
          _
        // Predicated region
        $region65: #{compact_bilinear_pooling.1} parent=43 // pred_check
          %p388 = pneg %p202
        $region66: #{compact_bilinear_pooling.1} parent=43 // pred_check_branch
          %390 = sbr.rel (%p388) target = $region68
        $region67: #{compact_bilinear_pooling.1} parent=43 // pred_region
          %391 = dma.done [#allocation13], 128
        $region68: #{compact_bilinear_pooling.1} parent=43 // pred_fallthru
          _
        %s392 = sand.u32 %s57, 1
        %s393 = scalar_lea.sflag [#allocation4], %s392
        %s394 = sand.u32 %s57, 1
        %s395 = smul.addr %s394, 32
        %s396 = scalar_lea.vmem [#allocation3], %s395
        %p397 = pneg %p70
        %p398 = pneg %p67
        %s399 = sand.u32 %s28, 1
        %s400 = scalar_lea.sflag [#allocation7], %s399
        %s401 = sand.u32 %s85, 1
        %s402 = smul.addr %s401, 32
        %s403 = scalar_lea.vmem [#allocation6], %s402
        %p404 = pneg %p98
        %p405 = pneg %p95
        %p406 = pneg %p124
        %p407 = pneg %p121
        %p408 = pneg %p150
        %p409 = pneg %p147
        %p410 = pneg %p176
        %p411 = pneg %p173
        %p412 = pneg %p202
        %p413 = pneg %p199
        %p414 = pneg %p230
        %p415 = pneg %p227
        %s416 = sand.u32 %s217, 1
        %s417 = scalar_lea.sflag [#allocation5], %s416
        %s418 = sand.u32 %s217, 1
        %s419 = smul.addr %s418, 2
        %s420 = scalar_lea.vmem [#allocation14], %s419
        %s421 = smul.u32 8, %s35
        %s422 = smul.u32 8, %s35
        %p424 = scmp.eq.s32.totalorder %s35, 0
        // Predicated region
        $region69: #{compact_bilinear_pooling.1} parent=43 // pred_check
          %p425 = pneg %p424
        $region70: #{compact_bilinear_pooling.1} parent=43 // pred_check_branch
          %427 = sbr.rel (%p425) target = $region72
        $region71: #{compact_bilinear_pooling.1} parent=43 // pred_region
          %v428 = vlaneseq
          %vm429 = vcmp.ge.s32.totalorder %v428, 0
          %vm430 = vcmp.lt.s32.totalorder %v428, 256
          %vm431 = vmand %vm429, %vm430
          %432 = vst.msk [vmem:[#allocation2] sm:$0x3] %vm431, 0.0
        $region72: #{compact_bilinear_pooling.1} parent=43 // pred_fallthru
          _
        %v433 = vld [vmem:[%s362] sm:$0xf]
        %v434 = vld [vmem:[%s362 + $0x4] sm:$0xf]
        %v435 = vld [vmem:[%s362 + $0x8] sm:$0xf]
        %v436 = vld [vmem:[%s362 + $0xc] sm:$0xf]
        %v437 = vld [vmem:[%s362 + $0x10] sm:$0xf]
        %v438 = vld [vmem:[%s362 + $0x14] sm:$0xf]
        %v439 = vld [vmem:[%s362 + $0x18] sm:$0xf]
        %v440 = vld [vmem:[%s362 + $0x1c] sm:$0xf]
        %v441 = vld [vmem:[%s371] sm:$0xf]
        %v442 = vld [vmem:[%s371 + $0x4] sm:$0xf]
        %v443 = vld [vmem:[%s371 + $0x8] sm:$0xf]
        %v444 = vld [vmem:[%s371 + $0xc] sm:$0xf]
        %v445 = vld [vmem:[%s371 + $0x10] sm:$0xf]
        %v446 = vld [vmem:[%s371 + $0x14] sm:$0xf]
        %v447 = vld [vmem:[%s371 + $0x18] sm:$0xf]
        %v448 = vld [vmem:[%s371 + $0x1c] sm:$0xf]
        %v449 = vld [vmem:[#allocation8] sm:$0xf]
        %v458 = vunpack.c.l.b16 %v433
        %v459 = vunpack.c.l.b16 %v434
        %v460 = vunpack.c.l.b16 %v435
        %v461 = vunpack.c.l.b16 %v436
        %v462 = vunpack.c.l.b16 %v437
        %v463 = vunpack.c.l.b16 %v438
        %v464 = vunpack.c.l.b16 %v439
        %v465 = vunpack.c.l.b16 %v440
        %v466 = vpack.c.b16 %v459, %v458
        %v467 = vpack.c.b16 %v461, %v460
        %v468 = vpack.c.b16 %v463, %v462
        %v469 = vpack.c.b16 %v465, %v464
        %vm470 = vcmask 64512
        %v472 = vsel %vm470, %v466, 0
        %v475 = vsel %vm470, %v467, 0
        %v478 = vsel %vm470, %v468, 0
        %v481 = vsel %vm470, %v469, 0
        %vm483 = vcmask 1043456
        %v485 = vsel %vm483, %v449, 0
        %487 = vmatprep.subr.bf16.mxu0 0
        %488 = vmatpush1.bf16.msra.mxu0 %v485
        %489 = vmatprep.subr.bf16.mxu0 0
        %490 = vmatpush1.bf16.msra.mxu0 0
        %491 = vmatprep.subr.bf16.mxu0 0
        %492 = vmatpush1.bf16.msra.mxu0 0
        %493 = vmatprep.subr.bf16.mxu0 0
        %494 = vmatpush1.bf16.msra.mxu0 0
        %495 = vmatprep.subr.bf16.mxu0 0
        %496 = vmatpush1.bf16.msra.mxu0 0
        %497 = vmatprep.subr.bf16.mxu0 0
        %498 = vmatpush1.bf16.msra.mxu0 0
        %499 = vmatprep.subr.bf16.mxu0 0
        %500 = vmatpush1.bf16.msra.mxu0 0
        %501 = vmatprep.subr.bf16.mxu0 0
        %502 = vmatpush1.bf16.msra.mxu0 0
        %503 = vmatprep.subr.bf16.mxu0 0
        %504 = vmatpush1.bf16.msra.mxu0 0
        %505 = vmatprep.subr.bf16.mxu0 0
        %506 = vmatpush1.bf16.msra.mxu0 0
        %507 = vmatprep.subr.bf16.mxu0 0
        %508 = vmatpush1.bf16.msra.mxu0 0
        %509 = vmatprep.subr.bf16.mxu0 0
        %510 = vmatpush1.bf16.msra.mxu0 0
        %511 = vmatprep.subr.bf16.mxu0 0
        %512 = vmatpush1.bf16.msra.mxu0 0
        %513 = vmatprep.subr.bf16.mxu0 0
        %514 = vmatpush1.bf16.msra.mxu0 0
        %515 = vmatprep.subr.bf16.mxu0 0
        %516 = vmatpush1.bf16.msra.mxu0 0
        %517 = vmatprep.subr.bf16.mxu0 0
        %518 = vmatpush1.bf16.msra.mxu0 0
        %519 = vmatprep.mubr.bf16.mxu0 0
        %520 = vmatmul.mubr.bf16.gmra.mrb[0].mxu0 %v472
        %v521 = vpop.f32.mrb[0].mxu0
        %v522 = vadd.f32 0.0, %v521
        %v523 = vpop.f32.mrb[0].mxu0
        %v524 = vpop.f32.mrb[0].mxu0
        %v525 = vadd.f32 0.0, %v524
        %v526 = vpop.f32.mrb[0].mxu0
        %527 = vmatprep.mubr.bf16.mxu0 0
        %528 = vmatmul.mubr.bf16.gmra.mrb[0].mxu0 %v475
        %v529 = vpop.f32.mrb[0].mxu0
        %v530 = vadd.f32 0.0, %v529
        %v531 = vpop.f32.mrb[0].mxu0
        %v532 = vpop.f32.mrb[0].mxu0
        %v533 = vadd.f32 0.0, %v532
        %v534 = vpop.f32.mrb[0].mxu0
        %535 = vmatprep.mubr.bf16.mxu0 0
        %536 = vmatmul.mubr.bf16.gmra.mrb[0].mxu0 %v478
        %v537 = vpop.f32.mrb[0].mxu0
        %v538 = vadd.f32 0.0, %v537
        %v539 = vpop.f32.mrb[0].mxu0
        %v540 = vpop.f32.mrb[0].mxu0
        %v541 = vadd.f32 0.0, %v540
        %v542 = vpop.f32.mrb[0].mxu0
        %543 = vmatprep.mubr.bf16.mxu0 0
        %544 = vmatmul.mubr.bf16.gmra.mrb[0].mxu0 %v481
        %v545 = vpop.f32.mrb[0].mxu0
        %v546 = vadd.f32 0.0, %v545
        %v547 = vpop.f32.mrb[0].mxu0
        %v548 = vpop.f32.mrb[0].mxu0
        %v549 = vadd.f32 0.0, %v548
        %v550 = vpop.f32.mrb[0].mxu0
        %551 = vdwg.mxu0
        %v552 = vld [vmem:[#allocation9] sm:$0xf]
        %v554 = vsel %vm483, %v552, 0
        %556 = vmatprep.subr.bf16.mxu0 0
        %557 = vmatpush1.bf16.msra.mxu0 %v554
        %558 = vmatprep.subr.bf16.mxu0 0
        %559 = vmatpush1.bf16.msra.mxu0 0
        %560 = vmatprep.subr.bf16.mxu0 0
        %561 = vmatpush1.bf16.msra.mxu0 0
        %562 = vmatprep.subr.bf16.mxu0 0
        %563 = vmatpush1.bf16.msra.mxu0 0
        %564 = vmatprep.subr.bf16.mxu0 0
        %565 = vmatpush1.bf16.msra.mxu0 0
        %566 = vmatprep.subr.bf16.mxu0 0
        %567 = vmatpush1.bf16.msra.mxu0 0
        %568 = vmatprep.subr.bf16.mxu0 0
        %569 = vmatpush1.bf16.msra.mxu0 0
        %570 = vmatprep.subr.bf16.mxu0 0
        %571 = vmatpush1.bf16.msra.mxu0 0
        %572 = vmatprep.subr.bf16.mxu0 0
        %573 = vmatpush1.bf16.msra.mxu0 0
        %574 = vmatprep.subr.bf16.mxu0 0
        %575 = vmatpush1.bf16.msra.mxu0 0
        %576 = vmatprep.subr.bf16.mxu0 0
        %577 = vmatpush1.bf16.msra.mxu0 0
        %578 = vmatprep.subr.bf16.mxu0 0
        %579 = vmatpush1.bf16.msra.mxu0 0
        %580 = vmatprep.subr.bf16.mxu0 0
        %581 = vmatpush1.bf16.msra.mxu0 0
        %582 = vmatprep.subr.bf16.mxu0 0
        %583 = vmatpush1.bf16.msra.mxu0 0
        %584 = vmatprep.subr.bf16.mxu0 0
        %585 = vmatpush1.bf16.msra.mxu0 0
        %586 = vmatprep.subr.bf16.mxu0 0
        %587 = vmatpush1.bf16.msra.mxu0 0
        %588 = vmatprep.mubr.bf16.mxu0 0
        %589 = vmatmul.mubr.bf16.gmra.mrb[0].mxu0 %v472
        %v590 = vpop.f32.mrb[0].mxu0
        %v591 = vadd.f32 0.0, %v590
        %v592 = vpop.f32.mrb[0].mxu0
        %v593 = vpop.f32.mrb[0].mxu0
        %v594 = vadd.f32 0.0, %v593
        %v595 = vpop.f32.mrb[0].mxu0
        %596 = vmatprep.mubr.bf16.mxu0 0
        %597 = vmatmul.mubr.bf16.gmra.mrb[0].mxu0 %v475
        %v598 = vpop.f32.mrb[0].mxu0
        %v599 = vadd.f32 0.0, %v598
        %v600 = vpop.f32.mrb[0].mxu0
        %v601 = vpop.f32.mrb[0].mxu0
        %v602 = vadd.f32 0.0, %v601
        %v603 = vpop.f32.mrb[0].mxu0
        %604 = vmatprep.mubr.bf16.mxu0 0
        %605 = vmatmul.mubr.bf16.gmra.mrb[0].mxu0 %v478
        %v606 = vpop.f32.mrb[0].mxu0
        %v607 = vadd.f32 0.0, %v606
        %v608 = vpop.f32.mrb[0].mxu0
        %v609 = vpop.f32.mrb[0].mxu0
        %v610 = vadd.f32 0.0, %v609
        %v611 = vpop.f32.mrb[0].mxu0
        %612 = vmatprep.mubr.bf16.mxu0 0
        %613 = vmatmul.mubr.bf16.gmra.mrb[0].mxu0 %v481
        %v614 = vpop.f32.mrb[0].mxu0
        %v615 = vadd.f32 0.0, %v614
        %v616 = vpop.f32.mrb[0].mxu0
        %v617 = vpop.f32.mrb[0].mxu0
        %v618 = vadd.f32 0.0, %v617
        %v619 = vpop.f32.mrb[0].mxu0
        %620 = vdwg.mxu0
        %v621 = vld [vmem:[#allocation11] sm:$0xf]
        %v622 = vld [vmem:[#allocation11 + $0x4] sm:$0xf]
        %v631 = vunpack.c.l.b16 %v441
        %v632 = vunpack.c.l.b16 %v442
        %v633 = vunpack.c.l.b16 %v443
        %v634 = vunpack.c.l.b16 %v444
        %v635 = vunpack.c.l.b16 %v445
        %v636 = vunpack.c.l.b16 %v446
        %v637 = vunpack.c.l.b16 %v447
        %v638 = vunpack.c.l.b16 %v448
        %v639 = vpack.c.b16 %v632, %v631
        %v640 = vpack.c.b16 %v634, %v633
        %v641 = vpack.c.b16 %v636, %v635
        %v642 = vpack.c.b16 %v638, %v637
        %v645 = vunpack.c.l.b16 %v621
        %v646 = vunpack.c.l.b16 %v622
        %v647 = vpack.c.b16 %v646, %v645
        %vm649 = vcmask 130048
        %v651 = vsel %vm649, %v639, 0
        %v654 = vsel %vm649, %v640, 0
        %v657 = vsel %vm649, %v641, 0
        %v660 = vsel %vm649, %v642, 0
        %662 = vmatprep.subr.bf16.mxu0 0
        %663 = vmatpush1.bf16.msra.mxu0 %v647
        %664 = vmatprep.subr.bf16.mxu0 0
        %665 = vmatpush1.bf16.msra.mxu0 0
        %666 = vmatprep.subr.bf16.mxu0 0
        %667 = vmatpush1.bf16.msra.mxu0 0
        %668 = vmatprep.subr.bf16.mxu0 0
        %669 = vmatpush1.bf16.msra.mxu0 0
        %670 = vmatprep.subr.bf16.mxu0 0
        %671 = vmatpush1.bf16.msra.mxu0 0
        %672 = vmatprep.subr.bf16.mxu0 0
        %673 = vmatpush1.bf16.msra.mxu0 0
        %674 = vmatprep.subr.bf16.mxu0 0
        %675 = vmatpush1.bf16.msra.mxu0 0
        %676 = vmatprep.subr.bf16.mxu0 0
        %677 = vmatpush1.bf16.msra.mxu0 0
        %678 = vmatprep.subr.bf16.mxu0 0
        %679 = vmatpush1.bf16.msra.mxu0 0
        %680 = vmatprep.subr.bf16.mxu0 0
        %681 = vmatpush1.bf16.msra.mxu0 0
        %682 = vmatprep.subr.bf16.mxu0 0
        %683 = vmatpush1.bf16.msra.mxu0 0
        %684 = vmatprep.subr.bf16.mxu0 0
        %685 = vmatpush1.bf16.msra.mxu0 0
        %686 = vmatprep.subr.bf16.mxu0 0
        %687 = vmatpush1.bf16.msra.mxu0 0
        %688 = vmatprep.subr.bf16.mxu0 0
        %689 = vmatpush1.bf16.msra.mxu0 0
        %690 = vmatprep.subr.bf16.mxu0 0
        %691 = vmatpush1.bf16.msra.mxu0 0
        %692 = vmatprep.subr.bf16.mxu0 0
        %693 = vmatpush1.bf16.msra.mxu0 0
        %694 = vmatprep.mubr.bf16.mxu0 0
        %695 = vmatmul.mubr.bf16.gmra.mrb[0].mxu0 %v651
        %v696 = vpop.f32.mrb[0].mxu0
        %v697 = vadd.f32 0.0, %v696
        %v698 = vpop.f32.mrb[0].mxu0
        %v699 = vpop.f32.mrb[0].mxu0
        %v700 = vadd.f32 0.0, %v699
        %v701 = vpop.f32.mrb[0].mxu0
        %702 = vmatprep.mubr.bf16.mxu0 0
        %703 = vmatmul.mubr.bf16.gmra.mrb[0].mxu0 %v654
        %v704 = vpop.f32.mrb[0].mxu0
        %v705 = vadd.f32 0.0, %v704
        %v706 = vpop.f32.mrb[0].mxu0
        %v707 = vpop.f32.mrb[0].mxu0
        %v708 = vadd.f32 0.0, %v707
        %v709 = vpop.f32.mrb[0].mxu0
        %710 = vmatprep.mubr.bf16.mxu0 0
        %711 = vmatmul.mubr.bf16.gmra.mrb[0].mxu0 %v657
        %v712 = vpop.f32.mrb[0].mxu0
        %v713 = vadd.f32 0.0, %v712
        %v714 = vpop.f32.mrb[0].mxu0
        %v715 = vpop.f32.mrb[0].mxu0
        %v716 = vadd.f32 0.0, %v715
        %v717 = vpop.f32.mrb[0].mxu0
        %718 = vmatprep.mubr.bf16.mxu0 0
        %719 = vmatmul.mubr.bf16.gmra.mrb[0].mxu0 %v660
        %v720 = vpop.f32.mrb[0].mxu0
        %v721 = vadd.f32 0.0, %v720
        %v722 = vpop.f32.mrb[0].mxu0
        %v723 = vpop.f32.mrb[0].mxu0
        %v724 = vadd.f32 0.0, %v723
        %v725 = vpop.f32.mrb[0].mxu0
        %726 = vdwg.mxu0
        %v727 = vld [vmem:[#allocation12] sm:$0xf]
        %v728 = vld [vmem:[#allocation12 + $0x4] sm:$0xf]
        %v731 = vunpack.c.l.b16 %v727
        %v732 = vunpack.c.l.b16 %v728
        %v733 = vpack.c.b16 %v732, %v731
        %735 = vmatprep.subr.bf16.mxu0 0
        %736 = vmatpush1.bf16.msra.mxu0 %v733
        %737 = vmatprep.subr.bf16.mxu0 0
        %738 = vmatpush1.bf16.msra.mxu0 0
        %739 = vmatprep.subr.bf16.mxu0 0
        %740 = vmatpush1.bf16.msra.mxu0 0
        %741 = vmatprep.subr.bf16.mxu0 0
        %742 = vmatpush1.bf16.msra.mxu0 0
        %743 = vmatprep.subr.bf16.mxu0 0
        %744 = vmatpush1.bf16.msra.mxu0 0
        %745 = vmatprep.subr.bf16.mxu0 0
        %746 = vmatpush1.bf16.msra.mxu0 0
        %747 = vmatprep.subr.bf16.mxu0 0
        %748 = vmatpush1.bf16.msra.mxu0 0
        %749 = vmatprep.subr.bf16.mxu0 0
        %750 = vmatpush1.bf16.msra.mxu0 0
        %751 = vmatprep.subr.bf16.mxu0 0
        %752 = vmatpush1.bf16.msra.mxu0 0
        %753 = vmatprep.subr.bf16.mxu0 0
        %754 = vmatpush1.bf16.msra.mxu0 0
        %755 = vmatprep.subr.bf16.mxu0 0
        %756 = vmatpush1.bf16.msra.mxu0 0
        %757 = vmatprep.subr.bf16.mxu0 0
        %758 = vmatpush1.bf16.msra.mxu0 0
        %759 = vmatprep.subr.bf16.mxu0 0
        %760 = vmatpush1.bf16.msra.mxu0 0
        %761 = vmatprep.subr.bf16.mxu0 0
        %762 = vmatpush1.bf16.msra.mxu0 0
        %763 = vmatprep.subr.bf16.mxu0 0
        %764 = vmatpush1.bf16.msra.mxu0 0
        %765 = vmatprep.subr.bf16.mxu0 0
        %766 = vmatpush1.bf16.msra.mxu0 0
        %767 = vmatprep.mubr.bf16.mxu0 0
        %768 = vmatmul.mubr.bf16.gmra.mrb[0].mxu0 %v651
        %v769 = vpop.f32.mrb[0].mxu0
        %v770 = vadd.f32 0.0, %v769
        %v771 = vpop.f32.mrb[0].mxu0
        %v772 = vpop.f32.mrb[0].mxu0
        %v773 = vadd.f32 0.0, %v772
        %v774 = vpop.f32.mrb[0].mxu0
        %775 = vmatprep.mubr.bf16.mxu0 0
        %776 = vmatmul.mubr.bf16.gmra.mrb[0].mxu0 %v654
        %v777 = vpop.f32.mrb[0].mxu0
        %v778 = vadd.f32 0.0, %v777
        %v779 = vpop.f32.mrb[0].mxu0
        %v780 = vpop.f32.mrb[0].mxu0
        %v781 = vadd.f32 0.0, %v780
        %v782 = vpop.f32.mrb[0].mxu0
        %783 = vmatprep.mubr.bf16.mxu0 0
        %784 = vmatmul.mubr.bf16.gmra.mrb[0].mxu0 %v657
        %v785 = vpop.f32.mrb[0].mxu0
        %v786 = vadd.f32 0.0, %v785
        %v787 = vpop.f32.mrb[0].mxu0
        %v788 = vpop.f32.mrb[0].mxu0
        %v789 = vadd.f32 0.0, %v788
        %v790 = vpop.f32.mrb[0].mxu0
        %791 = vmatprep.mubr.bf16.mxu0 0
        %792 = vmatmul.mubr.bf16.gmra.mrb[0].mxu0 %v660
        %v793 = vpop.f32.mrb[0].mxu0
        %v794 = vadd.f32 0.0, %v793
        %v795 = vpop.f32.mrb[0].mxu0
        %v796 = vpop.f32.mrb[0].mxu0
        %v797 = vadd.f32 0.0, %v796
        %v798 = vpop.f32.mrb[0].mxu0
        %799 = vdwg.mxu0
        %v800 = vmul.f32 %v522, %v697
        %v801 = vmul.f32 %v525, %v700
        %v802 = vmul.f32 %v530, %v705
        %v803 = vmul.f32 %v533, %v708
        %v804 = vmul.f32 %v538, %v713
        %v805 = vmul.f32 %v541, %v716
        %v806 = vmul.f32 %v546, %v721
        %v807 = vmul.f32 %v549, %v724
        %v808 = vmul.f32 %v591, %v770
        %v809 = vmul.f32 %v594, %v773
        %v810 = vmul.f32 %v599, %v778
        %v811 = vmul.f32 %v602, %v781
        %v812 = vmul.f32 %v607, %v786
        %v813 = vmul.f32 %v610, %v789
        %v814 = vmul.f32 %v615, %v794
        %v815 = vmul.f32 %v618, %v797
        %v816 = vsub.f32 %v800, %v808
        %v817 = vsub.f32 %v801, %v809
        %v818 = vsub.f32 %v802, %v810
        %v819 = vsub.f32 %v803, %v811
        %v820 = vsub.f32 %v804, %v812
        %v821 = vsub.f32 %v805, %v813
        %v822 = vsub.f32 %v806, %v814
        %v823 = vsub.f32 %v807, %v815
        %v824 = vmul.f32 %v522, %v770
        %v825 = vmul.f32 %v525, %v773
        %v826 = vmul.f32 %v530, %v778
        %v827 = vmul.f32 %v533, %v781
        %v828 = vmul.f32 %v538, %v786
        %v829 = vmul.f32 %v541, %v789
        %v830 = vmul.f32 %v546, %v794
        %v831 = vmul.f32 %v549, %v797
        %v832 = vmul.f32 %v591, %v697
        %v833 = vmul.f32 %v594, %v700
        %v834 = vmul.f32 %v599, %v705
        %v835 = vmul.f32 %v602, %v708
        %v836 = vmul.f32 %v607, %v713
        %v837 = vmul.f32 %v610, %v716
        %v838 = vmul.f32 %v615, %v721
        %v839 = vmul.f32 %v618, %v724
        %v840 = vadd.f32 %v824, %v832
        %v841 = vadd.f32 %v825, %v833
        %v842 = vadd.f32 %v826, %v834
        %v843 = vadd.f32 %v827, %v835
        %v844 = vadd.f32 %v828, %v836
        %v845 = vadd.f32 %v829, %v837
        %v846 = vadd.f32 %v830, %v838
        %v847 = vadd.f32 %v831, %v839
        %v848 = vld [vmem:[#allocation2] sm:$0x1]
        %v849 = vadd.f32 %v816, %v817
        %v850 = vadd.f32 %v849, %v818
        %v851 = vadd.f32 %v850, %v819
        %v852 = vadd.f32 %v851, %v820
        %v853 = vadd.f32 %v852, %v821
        %v854 = vadd.f32 %v853, %v822
        %v855 = vadd.f32 %v854, %v823
        %v856 = vrot.slane %v855, 4
        %v857 = vadd.f32 %v855, %v856
        %v858 = vrot.slane %v857, 2
        %v859 = vadd.f32 %v857, %v858
        %v860 = vrot.slane %v859, 1
        %v861 = vadd.f32 %v859, %v860
        %v862 = vadd.f32 %v848, %v861
        %v863 = vlaneseq
        %vm864 = vcmp.ge.s32.totalorder %v863, 0
        %vm865 = vcmp.lt.s32.totalorder %v863, 128
        %vm866 = vmand %vm864, %vm865
        %867 = vst.msk [vmem:[#allocation2] sm:$0x1] %vm866, %v862
        %v868 = vld [vmem:[#allocation2 + $0x1] sm:$0x1]
        %v869 = vadd.f32 %v840, %v841
        %v870 = vadd.f32 %v869, %v842
        %v871 = vadd.f32 %v870, %v843
        %v872 = vadd.f32 %v871, %v844
        %v873 = vadd.f32 %v872, %v845
        %v874 = vadd.f32 %v873, %v846
        %v875 = vadd.f32 %v874, %v847
        %v876 = vrot.slane %v875, 4
        %v877 = vadd.f32 %v875, %v876
        %v878 = vrot.slane %v877, 2
        %v879 = vadd.f32 %v877, %v878
        %v880 = vrot.slane %v879, 1
        %v881 = vadd.f32 %v879, %v880
        %v882 = vadd.f32 %v868, %v881
        %883 = vst.msk [vmem:[#allocation2 + $0x1] sm:$0x1] %vm866, %v882
        // Predicated region
        $region73: #{compact_bilinear_pooling.1} parent=43 // pred_check
          %p884 = pneg %p424
        $region74: #{compact_bilinear_pooling.1} parent=43 // pred_check_branch
          %886 = sbr.rel (%p884) target = $region76
        $region75: #{compact_bilinear_pooling.1} parent=43 // pred_region
          %v887 = vld [vmem:[#allocation2] sm:$0x3]
          %vm888 = vcmp.lt.s32.totalorder %v863, 256
          %vm889 = vmand %vm864, %vm888
          %890 = vst.msk [vmem:[%s420] sm:$0x3] %vm889, %v887
        $region76: #{compact_bilinear_pooling.1} parent=43 // pred_fallthru
          _
        %s891 = sand.u32 %s217, 1
        %s892 = scalar_lea.sflag [#allocation5], %s891
        %s893 = sand.u32 %s217, 1
        %s894 = smul.addr %s893, 2
        %s895 = scalar_lea.vmem [#allocation14], %s894
        // Predicated region
        $region77: #{compact_bilinear_pooling.1} parent=43 // pred_check
          %p896 = pneg %p227
        $region78: #{compact_bilinear_pooling.1} parent=43 // pred_check_branch
          %898 = sbr.rel (%p896) target = $region80
        $region79: #{compact_bilinear_pooling.1} parent=43 // pred_region
          %s900 = ssub.s32 32, 32
          %901 = vsyncadd %s892, %s900
          %s902 = smul.addr %s34, 2
          %s903 = smul.addr %s33, 2
          %s904 = sadd.s32 %s902, %s903
          %s905 = smul.addr %s904, 16
          %s906 = scalar_lea.hbm %s6, %s905
          %s908 = sshll.u32 %s895, 4
          %s909 = int_to_ptr.vmem [resolvable:$true] %s908
          %911 = dma.vmem_to_hbm [thread:$0]  %s909, 32, %s906, %s892
        $region80: #{compact_bilinear_pooling.1} parent=43 // pred_fallthru
          _
      $region44: #{compact_bilinear_pooling.1} parent=5 // pred_fallthru
        _
      %p912 = scmp.le.s32.totalorder 2, %s23
      // Predicated region
      $region81: #{compact_bilinear_pooling.1} parent=5 // pred_check
        %p913 = pneg %p912
      $region82: #{compact_bilinear_pooling.1} parent=5 // pred_check_branch
        %915 = sbr.rel (%p913) target = $region84
      $region83: #{compact_bilinear_pooling.1} parent=5 // pred_region
        %s916 = ssub.s32 %s23, 2
        // Predicated region
        $region85: #{compact_bilinear_pooling.1} parent=83 // pred_check
          %p917 = pneg %p233
        $region86: #{compact_bilinear_pooling.1} parent=83 // pred_check_branch
          %919 = sbr.rel (%p917) target = $region88
        $region87: #{compact_bilinear_pooling.1} parent=83 // pred_region
          %s920 = sand.u32 %s218, 1
          %s921 = scalar_lea.sflag [#allocation5], %s920
          %s922 = sand.u32 %s218, 1
          %s923 = smul.addr %s922, 2
          %s924 = scalar_lea.vmem [#allocation14], %s923
          %925 = dma.done %s921, 32
        $region88: #{compact_bilinear_pooling.1} parent=83 // pred_fallthru
          _
      $region84: #{compact_bilinear_pooling.1} parent=5 // pred_fallthru
        _
    $region6: #{compact_bilinear_pooling.1} parent=1 // loop_footer
      %s27 = sadd.s32 1, %s23
    $region7: #{compact_bilinear_pooling.1} parent=1 // loop_footer_branch
      %22 = sbr.rel target = $region3
    $region8: #{compact_bilinear_pooling.1} parent=1 // loop_exit
      _
    %926 = vsyncpa [#allocation4], 1
    %s927 = scalar_lea.sflag [#allocation4], 1
    %928 = vsyncpa %s927, 1
    %929 = vsyncpa [#allocation7], 1
    %s930 = scalar_lea.sflag [#allocation7], 1
    %931 = vsyncpa %s930, 1
    %932 = vsyncpa [#allocation10], 1
    %933 = vsyncpa [#allocation13], 1
    %934 = vsyncpa [#allocation5], 1
    %s935 = scalar_lea.sflag [#allocation5], 1
    %936 = vsyncpa %s935, 1

</llo_original>
